<compile_context>
chip_gen: v6e
topology: v6e:2x2x1
jax: 0.10.0
libtpu: 0.0.40
codegen_flags: <defaults>
</compile_context>

<pallas_src>
from functools import partial

import jax
import jax.numpy as jnp
from jax.experimental import pallas as pl
from jax.experimental.pallas import tpu as pltpu


def _shift2d_flat_kernel(x_ref, o_ref, *, W, HW, sd, sr):
    # Block shape (bb, HW): the whole (H, W) plane flattened onto lanes.
    x = x_ref[...]
    base = (sd * W) % HW                     # the H-roll expressed as a lane roll

    if sr == 0:                              # only the H component
        o_ref[...] = x if base == 0 else pltpu.roll(x, shift=base, axis=1)
        return

    s_hi = (base + sr) % HW
    hi = x if s_hi == 0 else pltpu.roll(x, shift=s_hi, axis=1)      # rows w >= sr
    s_lo = (HW - W) % HW                     # lo = roll(x, base+sr-W) = roll(hi, -W)
    lo = hi if s_lo == 0 else pltpu.roll(hi, shift=s_lo, axis=1)    # rows w <  sr

    # Wrap mask at (1, HW); jnp.where broadcasts it over sublanes (cheap).
    lane = jax.lax.broadcasted_iota(jnp.int32, (1, HW), 1)
    o_ref[...] = jnp.where((lane % W) < sr, lo, hi)


def _pick_batch_block(B, plane_bytes, target_bytes, pack):
    """Batch-block rows: <= ~target_bytes, a multiple of `pack`, and small
    enough that the grid gets >= ~4 steps when B allows (pipeline + megacore)."""
    assert B >= pack
    rows_by_bytes = max(pack, target_bytes // max(plane_bytes, 1))
    steps_cap = -(-B // 4)                       # cdiv(B, 4): aim for >= ~4 steps
    steps_cap = -(-steps_cap // pack) * pack     # round UP to the packing
    rows = min(rows_by_bytes, steps_cap, B)
    rows = max(pack, (rows // pack) * pack)      # round DOWN to the packing
    return int(rows)


def shift2d(x, shift, *, target_block_bytes=4 << 20, donate_input=False):
    """Pallas equivalent of Shift2D.forward: roll x by `shift` on (H, W).

    target_block_bytes is the per-generation knob: ~2-4 MiB is plenty on v5e,
    ~4-6 MiB on v6e, ~6-8 MiB on v7x (per-step overhead vs. HBM bandwidth).
    """
    N, C, H, W = x.shape
    sd = int(shift[0]) % H
    sr = int(shift[1]) % W
    if sd == 0 and sr == 0:
        return x                                 # identity: skip the HBM round trip

    B, HW = N * C, H * W
    itemsize = x.dtype.itemsize
    pack = max(8, 32 // itemsize)                # sublane packing: 8 f32 / 16 bf16 / 32 i8

    if HW % 128 != 0 or itemsize != 4:
        # TODO(synk): planes with H*W not a multiple of 128 (or sub-32-bit
        # dtypes) fall back to XLA's roll — Mosaic's lane rotate needs
        # (8,128)-aligned 32-bit values; a Pallas path for these shapes would
        # need a 4-quadrant copy kernel instead of lane rotates.
        return jnp.roll(x, shift=(sd, sr), axis=(-2, -1))

    xf = x.reshape(B, HW)                        # free collapse of contiguous dims
    B_eff = B
    if B < pack:                                 # keep the block sublane-aligned
        xf = jnp.pad(xf, ((0, pack - B), (0, 0)))
        B_eff = pack
    bb = _pick_batch_block(B_eff, HW * itemsize, target_block_bytes, pack)

    kernel = partial(_shift2d_flat_kernel, W=W, HW=HW, sd=sd, sr=sr)
    yf = pl.pallas_call(
        kernel,
        out_shape=jax.ShapeDtypeStruct((B_eff, HW), x.dtype),
        grid=(pl.cdiv(B_eff, bb),),
        in_specs=[pl.BlockSpec((bb, HW), lambda i: (i, 0))],
        out_specs=pl.BlockSpec((bb, HW), lambda i: (i, 0)),
        # Safe to alias: every grid step writes exactly the rows it reads and
        # visits each block once.  Off by default so callers may reuse x.
        input_output_aliases=({0: 0} if donate_input else {}),
        compiler_params=pltpu.CompilerParams(
            dimension_semantics=("parallel",),
            vmem_limit_bytes=48 * 1024 * 1024,
        ),
    )(xf)
    if B_eff != B:
        yf = yf[:B]
    return yf.reshape(N, C, H, W)


def shift2d_inverse(x, shift):
    """Pallas equivalent of Shift2D.inverse: roll by -shift, plus zero logdet."""
    inv = (-int(shift[0]), -int(shift[1]))
    return shift2d(x, inv), jnp.zeros((x.shape[0],), dtype=x.dtype)


if __name__ == "__main__":
    key = jax.random.PRNGKey(0)

    # ---- primary test: shapes implied by the module ----
    N, C, H, W = 2, 4, 16, 16
    x = jax.random.normal(key, (N, C, H, W), dtype=jnp.float32)
    shift = (3, 5)  # (shift_down, shift_right)

    y = jax.block_until_ready(shift2d(x, shift))
    y_ref = jnp.roll(x, shift=shift, axis=(-2, -1))
    assert jnp.array_equal(y, y_ref), "forward roll mismatch"

    x_rec, logdet = shift2d_inverse(y, shift)
    x_rec = jax.block_until_ready(x_rec)
    logdet = jax.block_until_ready(logdet)
    assert jnp.array_equal(x_rec, x), "inverse roll did not recover input"
    assert logdet.shape == (N,) and jnp.all(logdet == 0.0)

    # ---- multi-block grid: B=20, H*W=128, partial last block, neg/oversized shifts ----
    k2 = jax.random.PRNGKey(1)
    N2, C2, H2, W2 = 5, 4, 8, 16
    x2 = jax.random.normal(k2, (N2, C2, H2, W2), dtype=jnp.float32)
    shift2 = (-7, 23)
    # tiny target block -> 8-row blocks, grid of 3 with a partial last block
    y2 = jax.block_until_ready(shift2d(x2, shift2, target_block_bytes=4 * 1024))
    y2_ref = jnp.roll(x2, shift=shift2, axis=(-2, -1))
    assert jnp.array_equal(y2, y2_ref), "multi-block roll mismatch"

    # ---- identity shift: early return, no kernel launch ----
    y3 = jax.block_until_ready(shift2d(x, (H, 2 * W)))
    assert jnp.array_equal(y3, x), "identity shift mismatch"

    # ---- non-128-aligned plane: exercises the documented XLA fallback ----
    k4 = jax.random.PRNGKey(2)
    x4 = jax.random.normal(k4, (2, 3, 12, 10), dtype=jnp.float32)
    y4 = jax.block_until_ready(shift2d(x4, (5, 3)))
    assert jnp.array_equal(y4, jnp.roll(x4, shift=(5, 3), axis=(-2, -1))), \
        "fallback roll mismatch"

    print("KERNEL_OK")
</pallas_src>

<mosaic_0001>
module attributes {stable_mosaic.version = 11 : i64} {
  func.func @_shift2d_flat_kernel(%arg0: i32, %arg1: memref<8x256xf32, #tpu.memory_space<vmem>>, %arg2: memref<8x256xf32, #tpu.memory_space<vmem>>) attributes {dimension_semantics = [#tpu.dimension_semantics<parallel>], iteration_bounds = array<i64: 1>, scalar_prefetch = 0 : i64, scratch_operands = 0 : i64, tpu.core_type = #tpu.core_type<tc>, window_params = [{transform_indices = @transform_0, window_bounds = array<i64: 8, 256>}, {transform_indices = @transform_1, window_bounds = array<i64: 8, 256>}]} {
    %c0 = arith.constant 0 : index
    %c0_0 = arith.constant 0 : index
    %0 = vector.load %arg1[%c0, %c0_0] : memref<8x256xf32, #tpu.memory_space<vmem>>, vector<8x256xf32>
    %c53_i32 = arith.constant 53 : i32
    %1 = tpu.dynamic_rotate %0 by %c53_i32 dim 1 : vector<8x256xf32>, i32 -> vector<8x256xf32>
    %c240_i32 = arith.constant 240 : i32
    %2 = tpu.dynamic_rotate %1 by %c240_i32 dim 1 : vector<8x256xf32>, i32 -> vector<8x256xf32>
    %3 = tpu.iota {dimensions = array<i32: 1>} : vector<1x256xi32>
    %c16_i32 = arith.constant 16 : i32
    %c0_i32 = arith.constant 0 : i32
    %4 = arith.cmpi eq, %c16_i32, %c0_i32 : i32
    %c1_i32 = arith.constant 1 : i32
    %5 = arith.select %4, %c1_i32, %c16_i32 : i32
    %6 = vector.broadcast %5 : i32 to vector<1x256xi32>
    %7 = arith.remsi %3, %6 : vector<1x256xi32>
    %c0_i32_1 = arith.constant 0 : i32
    %8 = vector.broadcast %c0_i32_1 : i32 to vector<1x256xi32>
    %9 = arith.cmpi ne, %7, %8 : vector<1x256xi32>
    %c0_i32_2 = arith.constant 0 : i32
    %10 = vector.broadcast %c0_i32_2 : i32 to vector<1x256xi32>
    %11 = arith.cmpi slt, %7, %10 : vector<1x256xi32>
    %c0_i32_3 = arith.constant 0 : i32
    %12 = arith.cmpi slt, %5, %c0_i32_3 : i32
    %13 = vector.broadcast %12 : i1 to vector<1x256xi1>
    %14 = vector.broadcast %13 : vector<1x256xi1> to vector<1x256xi1>
    %15 = arith.xori %11, %14 : vector<1x256xi1>
    %16 = arith.andi %15, %9 : vector<1x256xi1>
    %17 = vector.broadcast %5 : i32 to vector<1x256xi32>
    %18 = arith.addi %7, %17 : vector<1x256xi32>
    %19 = arith.select %16, %18, %7 : vector<1x256xi1>, vector<1x256xi32>
    %c5_i32 = arith.constant 5 : i32
    %20 = vector.broadcast %c5_i32 : i32 to vector<1x256xi32>
    %21 = arith.cmpi slt, %19, %20 : vector<1x256xi32>
    %22 = vector.shape_cast %21 : vector<1x256xi1> to vector<1x256xi1>
    %23 = vector.broadcast %22 : vector<1x256xi1> to vector<8x256xi1>
    %24 = arith.select %23, %2, %1 : vector<8x256xi1>, vector<8x256xf32>
    %c0_4 = arith.constant 0 : index
    %c0_5 = arith.constant 0 : index
    %25 = vector.load %arg2[%c0_4, %c0_5] : memref<8x256xf32, #tpu.memory_space<vmem>>, vector<8x256xf32>
    tpu.vector_store %arg2[%c0_4, %c0_5], %24 {strides = array<i32>} : memref<8x256xf32, #tpu.memory_space<vmem>>, vector<8x256xf32>,
    return
  }
  func.func @transform_0(%arg0: i32) -> (i32, i32) {
    %c0_i32 = arith.constant 0 : i32
    %c0_i32_0 = arith.constant 0 : i32
    return %arg0, %c0_i32 : i32, i32
  }
  func.func @transform_1(%arg0: i32) -> (i32, i32) {
    %c0_i32 = arith.constant 0 : i32
    %c0_i32_0 = arith.constant 0 : i32
    return %arg0, %c0_i32 : i32, i32
  }
}

</mosaic_0001>

<llo_original>
// kernel: tpu_custom_call.1
$region0: #{tpu_custom_call.1}
  #allocation0 [shape = 'u32[]', space=smem, size = 0x4, offset = 0x4, fixed_abs, tag = 'smem constant byte address 0x4 - core index']
  #allocation1 [shape = 'u32[144,128]{1,0:T(1,128)}', space=vmem, size = 0x12000, scoped, tag = 'internal scratch']
  %s0 = inlined_call_operand.hbm [shape: f32[8,256], index: 0, kind: input, shape index: {}]
  %s1 = inlined_call_operand.hbm [shape: f32[8,256], index: 1, kind: output, shape index: {}]
  %s2 = sld [smem:[#allocation0]]
  $region18: #{tpu_custom_call.1} parent=0
    _
  %s4 = ssub.s32 1, %s2
  %s5 = scalar_select 0, %s4, %s2
  $region1: #{tpu_custom_call.1} parent=0
    #allocation2 [shape = 'u8[8192]{0}', space=vmem, size = 0x2000, scoped, tag = 'input window, operand 0, single buffered']
    #allocation3 [shape = 's32[1]{0}', space=sflag, size = 0x4, scoped, tag = 'scoped memory for tpu_custom_call.1']
    #allocation4 [shape = 's32[1]{0}', space=sflag, size = 0x4, scoped, tag = 'scoped memory for tpu_custom_call.1']
    #allocation5 [shape = 'u8[8192]{0}', space=vmem, size = 0x2000, scoped, tag = 'output window, operand 0, single buffered']
    %6 = vsyncpa [#allocation3], 0
    %7 = vsyncpa [#allocation4], 0
    // Predicated region
    $region2: #{tpu_custom_call.1} parent=1 // pred_check
      _
    $region3: #{tpu_custom_call.1} parent=1 // pred_check_branch
      %9 = sbr.rel (0) target = $region5
    $region4: #{tpu_custom_call.1} parent=1 // pred_region
      %s11 = ssub.s32 256, 256
      %12 = vsyncadd [#allocation3], %s11
      %s14 = sshll.u32 [#allocation2], 4
      %s15 = int_to_ptr.vmem [resolvable:$true] %s14
      %17 = dma.hbm_to_vmem [thread:$0]  %s0, 256, %s15, [#allocation3]
    $region5: #{tpu_custom_call.1} parent=1 // pred_fallthru
      _
    // Predicated region
    $region6: #{tpu_custom_call.1} parent=1 // pred_check
      _
    $region7: #{tpu_custom_call.1} parent=1 // pred_check_branch
      %19 = sbr.rel (0) target = $region9
    $region8: #{tpu_custom_call.1} parent=1 // pred_region
      %20 = dma.done [#allocation3], 256
    $region9: #{tpu_custom_call.1} parent=1 // pred_fallthru
      _
    %v21 = vld [vmem:[#allocation2] sm:$0xff]
    %v22 = vld [vmem:[#allocation2 + $0x8] sm:$0xff]
    %23 = vrot.lane.b32.xlu0 %v21, 53
    %v24 = vpop.permute.xlu0 %23
    %25 = vrot.lane.b32.xlu0 %v22, 53
    %v26 = vpop.permute.xlu0 %25
    %v27 = vlaneseq
    %v28 = vand.u32 %v27, 127
    %vm29 = vcmp.lt.s32.totalorder %v28, 53
    %v30 = vsel %vm29, %v24, %v26
    %v31 = vsel %vm29, %v26, %v24
    %32 = vrot.lane.b32.xlu0 %v31, 112
    %v33 = vpop.permute.xlu0 %32
    %34 = vrot.lane.b32.xlu0 %v30, 112
    %v35 = vpop.permute.xlu0 %34
    %vm36 = vcmp.lt.s32.totalorder %v28, 112
    %v37 = vsel %vm36, %v33, %v35
    %v38 = vsel %vm36, %v35, %v33
    %v39 = vadd.s32 %v28, 128
    %vm40 = vcmp.lt.s32.totalorder %v28, 0
    %v41 = vsub.s32 0, %v28
    %v42 = vsel %vm40, %v41, %v28
    %v43 = vshrl.u32 %v42, 4
    %v44 = vand.u32 %v42, 15
    %v45 = vsub.s32 0, %v44
    %v46 = vsel %vm40, %v45, %v44
    %vm47 = vcmp.lt.s32.totalorder %v39, 0
    %v48 = vsub.s32 0, %v39
    %v49 = vsel %vm47, %v48, %v39
    %v50 = vshrl.u32 %v49, 4
    %v51 = vand.u32 %v49, 15
    %v52 = vsub.s32 0, %v51
    %v53 = vsel %vm47, %v52, %v51
    %vm54 = vcmp.ne.s32.totalorder %v46, 0
    %vm55 = vcmp.ne.s32.totalorder %v53, 0
    %vm56 = vcmp.lt.s32.totalorder %v46, 0
    %vm57 = vcmp.lt.s32.totalorder %v53, 0
    %vm58 = vmand %vm56, %vm54
    %vm59 = vmand %vm57, %vm55
    %v60 = vadd.s32 %v46, 16
    %v61 = vadd.s32 %v53, 16
    %v62 = vsel %vm58, %v60, %v46
    %v63 = vsel %vm59, %v61, %v53
    %vm64 = vcmp.lt.s32.totalorder %v62, 5
    %vm65 = vcmp.lt.s32.totalorder %v63, 5
    %v66 = vsel %vm64, 1, 0
    %v67 = vsel %vm65, 1, 0
    %vm68 = vcmp.eq.s32.totalorder %v66, 1
    %vm69 = vcmp.eq.s32.totalorder %v67, 1
    %v70 = vsel %vm68, %v37, %v31
    %v71 = vsel %vm69, %v38, %v30
    %72 = vst [vmem:[#allocation5] sm:$0xff] %v70
    %73 = vst [vmem:[#allocation5 + $0x8] sm:$0xff] %v71
    // Predicated region
    $region10: #{tpu_custom_call.1} parent=1 // pred_check
      _
    $region11: #{tpu_custom_call.1} parent=1 // pred_check_branch
      %75 = sbr.rel (0) target = $region13
    $region12: #{tpu_custom_call.1} parent=1 // pred_region
      %s77 = ssub.s32 256, 256
      %78 = vsyncadd [#allocation4], %s77
      %s80 = sshll.u32 [#allocation5], 4
      %s81 = int_to_ptr.vmem [resolvable:$true] %s80
      %83 = dma.vmem_to_hbm [thread:$0]  %s81, 256, %s1, [#allocation4]
    $region13: #{tpu_custom_call.1} parent=1 // pred_fallthru
      _
    // Predicated region
    $region14: #{tpu_custom_call.1} parent=1 // pred_check
      _
    $region15: #{tpu_custom_call.1} parent=1 // pred_check_branch
      %85 = sbr.rel (0) target = $region17
    $region16: #{tpu_custom_call.1} parent=1 // pred_region
      %86 = dma.done [#allocation4], 256
    $region17: #{tpu_custom_call.1} parent=1 // pred_fallthru
      _
    %87 = vsyncpa [#allocation3], 1
    %88 = vsyncpa [#allocation4], 1

</llo_original>
